<compile_context>
chip_gen: v7x
topology: tpu7x:2x2x1
jax: 0.10.0
libtpu: 0.0.40
codegen_flags: <defaults>
</compile_context>

<pallas_src>
import functools

import jax
import jax.numpy as jnp
from jax.experimental import pallas as pl
from jax.experimental.pallas import tpu as pltpu


def _mha_kernel(x_ref, w_ref, b_ref, out_ref, attnw_ref, *, N, L, S, E):
    """Single-invocation single-head MHA forward.

    x_ref:     (N*(L+S), E)  -- x1 rows (queries) followed by x2 rows (keys/values)
    w_ref:     (E, 4E)       -- [Wq^T * 1/sqrt(E) | Wk^T | Wv^T | Wo^T]
    b_ref:     (1, 4E)       -- [bq  * 1/sqrt(E) | bk  | bv  | bo ]
    out_ref:   (N, L, E)     -- attn_output
    attnw_ref: (N, L, S)     -- attn_output_weights
    """
    x = x_ref[...]                        # (N*(L+S), E)
    w_in = w_ref[:, :3 * E]               # (E, 3E)
    woT = w_ref[:, 3 * E:]                # (E, E)
    b_in = b_ref[:, :3 * E]               # (1, 3E)
    bo = b_ref[:, 3 * E:]                 # (1, E)

    # One fused MXU push for all three input projections.  The "wasted" rows
    # (kv-proj of x1 rows, q-proj of x2 rows) are free at this size.
    proj = jnp.dot(x, w_in, preferred_element_type=jnp.float32) + b_in

    q = proj[:N * L, :E].reshape(N, L, E)        # scale already folded into Wq/bq
    k = proj[N * L:, E:2 * E].reshape(N, S, E)
    v = proj[N * L:, 2 * E:].reshape(N, S, E)

    # Scaled dot-product attention, batched over N.
    scores = jnp.einsum('nld,nsd->nls', q, k,
                        preferred_element_type=jnp.float32)     # (N, L, S)
    m = jnp.max(scores, axis=-1, keepdims=True)
    e = jnp.exp(scores - m)
    denom = jnp.sum(e, axis=-1, keepdims=True)
    p = e / denom                                # exact softmax (user-visible output)
    ctx = jnp.einsum('nls,nsd->nld', p, v,
                     preferred_element_type=jnp.float32)        # (N, L, E)

    # Output projection.
    out = jnp.dot(ctx.reshape(N * L, E), woT,
                  preferred_element_type=jnp.float32) + bo      # (N*L, E)

    out_ref[...] = out.reshape(N, L, E).astype(out_ref.dtype)
    attnw_ref[...] = p.astype(attnw_ref.dtype)


def prepare_params(params):
    """One-time wrapper-side prep: pre-transpose, fuse into lane-dense slabs,
    and fold the 1/sqrt(E) softmax scale into the q projection (exact)."""
    E = params["wq"].shape[0]
    scale = 1.0 / jnp.sqrt(jnp.float32(E))
    w_slab = jnp.concatenate(
        [params["wq"].T * scale, params["wk"].T, params["wv"].T, params["wo"].T],
        axis=1)                                                       # (E, 4E)
    b_slab = jnp.concatenate(
        [params["bq"] * scale, params["bk"], params["bv"], params["bo"]]
    ).reshape(1, 4 * E)                                               # (1, 4E)
    return {"w": w_slab, "b": b_slab}


def multihead_attention(x1, x2, prep):
    """x1: (N, L, E) query, x2: (N, S, E) key/value (batch-first layout)."""
    N, L, E = x1.shape
    S = x2.shape[1]

    # Stack query and key/value rows into a single matmul LHS (row-major fold).
    x_all = jnp.concatenate([x1.reshape(N * L, E), x2.reshape(N * S, E)], axis=0)

    vmem = pl.BlockSpec(memory_space=pltpu.MemorySpace.VMEM)
    kernel = functools.partial(_mha_kernel, N=N, L=L, S=S, E=E)

    out, attnw = pl.pallas_call(
        kernel,
        out_shape=(jax.ShapeDtypeStruct((N, L, E), jnp.float32),
                   jax.ShapeDtypeStruct((N, L, S), jnp.float32)),
        in_specs=[vmem, vmem, vmem],
        out_specs=(vmem, vmem),
    )(x_all, prep["w"], prep["b"])

    return out, attnw


def mha_reference(x1, x2, params):
    """Pure-JAX reference, batch-first layout."""
    E = x1.shape[-1]
    hp = jax.lax.Precision.HIGHEST
    q = jnp.einsum('nle,fe->nlf', x1, params["wq"], precision=hp) + params["bq"]
    k = jnp.einsum('nse,fe->nsf', x2, params["wk"], precision=hp) + params["bk"]
    v = jnp.einsum('nse,fe->nsf', x2, params["wv"], precision=hp) + params["bv"]
    scores = jnp.einsum('nld,nsd->nls', q, k, precision=hp) / jnp.sqrt(jnp.float32(E))
    p = jax.nn.softmax(scores, axis=-1)
    ctx = jnp.einsum('nls,nsd->nld', p, v, precision=hp)
    out = jnp.einsum('nld,fd->nlf', ctx, params["wo"], precision=hp) + params["bo"]
    return out, p


def init_params(key, E):
    # deterministic, Xavier-style init; mirrors in_proj_weight (3E, E) split + out_proj (E, E)
    ks = jax.random.split(key, 5)
    scale = 1.0 / jnp.sqrt(jnp.float32(E))
    in_proj_w = jax.random.normal(ks[0], (3 * E, E), jnp.float32) * scale
    in_proj_b = jax.random.normal(ks[1], (3 * E,), jnp.float32) * 0.01
    wo = jax.random.normal(ks[2], (E, E), jnp.float32) * scale
    bo = jax.random.normal(ks[3], (E,), jnp.float32) * 0.01
    return {
        "wq": in_proj_w[:E], "wk": in_proj_w[E:2 * E], "wv": in_proj_w[2 * E:],
        "bq": in_proj_b[:E], "bk": in_proj_b[E:2 * E], "bv": in_proj_b[2 * E:],
        "wo": wo, "bo": bo,
    }


if __name__ == "__main__":
    # small shapes consistent with the intended MHA forward (batch-first layout)
    N, L, S, E = 2, 8, 8, 32
    key = jax.random.PRNGKey(0)
    k1, k2, kp = jax.random.split(key, 3)
    x1 = jax.random.normal(k1, (N, L, E), jnp.float32)   # query
    x2 = jax.random.normal(k2, (N, S, E), jnp.float32)   # key / value
    params = init_params(kp, E)
    prep = prepare_params(params)

    run = jax.jit(multihead_attention)
    attn_output, attn_weights = run(x1, x2, prep)
    jax.block_until_ready((attn_output, attn_weights))

    assert attn_output.shape == (N, L, E)
    assert attn_weights.shape == (N, L, S)
    # exact softmax division -> rows sum to 1 at f32 precision
    assert bool(jnp.allclose(jnp.sum(attn_weights, axis=-1), 1.0, atol=1e-3))

    ref_out, ref_p = mha_reference(x1, x2, params)
    assert bool(jnp.allclose(attn_weights, ref_p, rtol=2e-3, atol=2e-3))
    assert bool(jnp.allclose(attn_output, ref_out, rtol=2e-3, atol=2e-3))
    print("KERNEL_OK")
</pallas_src>

<mosaic_0001>
module attributes {stable_mosaic.version = 11 : i64} {
  func.func @_mha_kernel(%arg0: memref<32x32xf32, #tpu.memory_space<vmem>>, %arg1: memref<32x128xf32, #tpu.memory_space<vmem>>, %arg2: memref<1x128xf32, #tpu.memory_space<vmem>>, %arg3: memref<2x8x32xf32, #tpu.memory_space<vmem>>, %arg4: memref<2x8x8xf32, #tpu.memory_space<vmem>>) attributes {dimension_semantics = [], scalar_prefetch = 0 : i64, scratch_operands = 0 : i64, tpu.core_type = #tpu.core_type<tc>} {
    %c0 = arith.constant 0 : index
    %c0_0 = arith.constant 0 : index
    %0 = vector.load %arg0[%c0, %c0_0] : memref<32x32xf32, #tpu.memory_space<vmem>>, vector<32x32xf32>
    %c0_1 = arith.constant 0 : index
    %c0_2 = arith.constant 0 : index
    %1 = vector.load %arg1[%c0_1, %c0_2] : memref<32x128xf32, #tpu.memory_space<vmem>>, vector<32x96xf32>
    %c0_3 = arith.constant 0 : index
    %c96 = arith.constant 96 : index
    %2 = vector.load %arg1[%c0_3, %c96] : memref<32x128xf32, #tpu.memory_space<vmem>>, vector<32x32xf32>
    %c0_4 = arith.constant 0 : index
    %c0_5 = arith.constant 0 : index
    %3 = vector.load %arg2[%c0_4, %c0_5] : memref<1x128xf32, #tpu.memory_space<vmem>>, vector<1x96xf32>
    %c0_6 = arith.constant 0 : index
    %c96_7 = arith.constant 96 : index
    %4 = vector.load %arg2[%c0_6, %c96_7] : memref<1x128xf32, #tpu.memory_space<vmem>>, vector<1x32xf32>
    %cst = arith.constant dense<0.000000e+00> : vector<32x96xf32>
    %5 = tpu.matmul %0, %1, %cst {dimension_numbers = #tpu.dot_dimension_numbers<[1], [0], [0], [1], [0, 0, 1, 1], [], []>} : vector<32x32xf32>, vector<32x96xf32>, vector<32x96xf32> -> vector<32x96xf32>
    %6 = vector.broadcast %3 : vector<1x96xf32> to vector<32x96xf32>
    %7 = arith.addf %5, %6 : vector<32x96xf32>
    %8 = vector.extract_strided_slice %7 {offsets = [0, 0], sizes = [16, 32], strides = [1, 1]} : vector<32x96xf32> to vector<16x32xf32>
    %9 = vector.shape_cast %8 : vector<16x32xf32> to vector<2x8x32xf32>
    %10 = vector.extract_strided_slice %7 {offsets = [16, 32], sizes = [16, 32], strides = [1, 1]} : vector<32x96xf32> to vector<16x32xf32>
    %11 = vector.shape_cast %10 : vector<16x32xf32> to vector<2x8x32xf32>
    %12 = vector.extract_strided_slice %7 {offsets = [16, 64], sizes = [16, 32], strides = [1, 1]} : vector<32x96xf32> to vector<16x32xf32>
    %13 = vector.shape_cast %12 : vector<16x32xf32> to vector<2x8x32xf32>
    "tpu.trace_start"() <{level = 10 : i32, message = "nld,nsd->nls"}> : () -> ()
    %cst_8 = arith.constant dense<0.000000e+00> : vector<2x8x8xf32>
    %14 = tpu.matmul %9, %11, %cst_8 {dimension_numbers = #tpu.dot_dimension_numbers<[2], [2], [1], [1], [0, 0, 0, 1, 1, 1], [0], [0]>} : vector<2x8x32xf32>, vector<2x8x32xf32>, vector<2x8x8xf32> -> vector<2x8x8xf32>
    "tpu.trace_stop"() : () -> ()
    %cst_9 = arith.constant dense<0xFF800000> : vector<2x8xf32>
    %15 = vector.multi_reduction <maximumf>, %14, %cst_9 [2] : vector<2x8x8xf32> to vector<2x8xf32>
    %16 = vector.shape_cast %15 : vector<2x8xf32> to vector<2x8x1xf32>
    %17 = vector.broadcast %16 : vector<2x8x1xf32> to vector<2x8x8xf32>
    %18 = arith.subf %14, %17 : vector<2x8x8xf32>
    %19 = math.exp %18 : vector<2x8x8xf32>
    %cst_10 = arith.constant dense<0.000000e+00> : vector<2x8xf32>
    %20 = vector.multi_reduction <add>, %19, %cst_10 [2] : vector<2x8x8xf32> to vector<2x8xf32>
    %21 = vector.shape_cast %20 : vector<2x8xf32> to vector<2x8x1xf32>
    %22 = vector.broadcast %21 : vector<2x8x1xf32> to vector<2x8x8xf32>
    %23 = arith.divf %19, %22 : vector<2x8x8xf32>
    "tpu.trace_start"() <{level = 10 : i32, message = "nls,nsd->nld"}> : () -> ()
    %cst_11 = arith.constant dense<0.000000e+00> : vector<2x8x32xf32>
    %24 = tpu.matmul %23, %13, %cst_11 {dimension_numbers = #tpu.dot_dimension_numbers<[2], [1], [1], [2], [0, 0, 0, 1, 1, 2], [0], [0]>} : vector<2x8x8xf32>, vector<2x8x32xf32>, vector<2x8x32xf32> -> vector<2x8x32xf32>
    "tpu.trace_stop"() : () -> ()
    %25 = vector.shape_cast %24 : vector<2x8x32xf32> to vector<16x32xf32>
    %cst_12 = arith.constant dense<0.000000e+00> : vector<16x32xf32>
    %26 = tpu.matmul %25, %2, %cst_12 {dimension_numbers = #tpu.dot_dimension_numbers<[1], [0], [0], [1], [0, 0, 1, 1], [], []>} : vector<16x32xf32>, vector<32x32xf32>, vector<16x32xf32> -> vector<16x32xf32>
    %27 = vector.broadcast %4 : vector<1x32xf32> to vector<16x32xf32>
    %28 = arith.addf %26, %27 : vector<16x32xf32>
    %29 = vector.shape_cast %28 : vector<16x32xf32> to vector<2x8x32xf32>
    %c0_13 = arith.constant 0 : index
    %c0_14 = arith.constant 0 : index
    %c0_15 = arith.constant 0 : index
    %30 = vector.load %arg3[%c0_13, %c0_14, %c0_15] : memref<2x8x32xf32, #tpu.memory_space<vmem>>, vector<2x8x32xf32>
    tpu.vector_store %arg3[%c0_13, %c0_14, %c0_15], %29 {strides = array<i32>} : memref<2x8x32xf32, #tpu.memory_space<vmem>>, vector<2x8x32xf32>,
    %c0_16 = arith.constant 0 : index
    %c0_17 = arith.constant 0 : index
    %c0_18 = arith.constant 0 : index
    %31 = vector.load %arg4[%c0_16, %c0_17, %c0_18] : memref<2x8x8xf32, #tpu.memory_space<vmem>>, vector<2x8x8xf32>
    tpu.vector_store %arg4[%c0_16, %c0_17, %c0_18], %23 {strides = array<i32>} : memref<2x8x8xf32, #tpu.memory_space<vmem>>, vector<2x8x8xf32>,
    return
  }
}

</mosaic_0001>

<llo_original>
// kernel: multihead_attention.1
$region0: #{multihead_attention.1}
  #allocation0 [shape = 'u32[]', space=smem, size = 0x4, offset = 0x4, fixed_abs, tag = 'smem constant byte address 0x4 - core index']
  #allocation1 [shape = 'u32[144,128]{1,0:T(1,128)}', space=vmem, size = 0x12000, scoped, tag = 'internal scratch']
  %s0 = inlined_call_operand.vmem [shape: f32[32,32], index: 0, kind: input, shape index: {}]
  %s1 = inlined_call_operand.vmem [shape: f32[32,128], index: 1, kind: input, shape index: {}]
  %s2 = inlined_call_operand.vmem [shape: f32[1,128], index: 2, kind: input, shape index: {}]
  %s3 = inlined_call_operand.hbm [shape: f32[2,8,32], index: 3, kind: output, shape index: {0}]
  %s4 = inlined_call_operand.hbm [shape: f32[2,8,8], index: 4, kind: output, shape index: {1}]
  %5 = xla_tuple %s3, %s4
  %s6 = sld [smem:[#allocation0]]
  $region30: #{multihead_attention.1} parent=0
    _
  %s8 = ssub.s32 1, %s6
  %s9 = scalar_select 0, %s8, %s6
  $region1: #{multihead_attention.1} parent=0
    #allocation2 [shape = 'u8[8192]{0}', space=vmem, size = 0x2000, scoped, tag = 'output window, operand 0, single buffered']
    #allocation3 [shape = 's32[1]{0}', space=sflag, size = 0x4, scoped, tag = 'scoped memory for multihead_attention.1']
    #allocation4 [shape = 'u8[8192]{0}', space=vmem, size = 0x2000, scoped, tag = 'output window, operand 1, single buffered']
    #allocation5 [shape = 's32[1]{0}', space=sflag, size = 0x4, scoped, tag = 'scoped memory for multihead_attention.1']
    %10 = vsyncpa [#allocation3], 0
    %11 = vsyncpa [#allocation5], 0
    // Predicated region
    $region2: #{multihead_attention.1} parent=1 // pred_check
      _
    $region3: #{multihead_attention.1} parent=1 // pred_check_branch
      %13 = sbr.rel (0) target = $region5
    $region4: #{multihead_attention.1} parent=1 // pred_region
      _
    $region5: #{multihead_attention.1} parent=1 // pred_fallthru
      _
    // Predicated region
    $region6: #{multihead_attention.1} parent=1 // pred_check
      _
    $region7: #{multihead_attention.1} parent=1 // pred_check_branch
      %15 = sbr.rel (0) target = $region9
    $region8: #{multihead_attention.1} parent=1 // pred_region
      _
    $region9: #{multihead_attention.1} parent=1 // pred_fallthru
      _
    // Predicated region
    $region10: #{multihead_attention.1} parent=1 // pred_check
      _
    $region11: #{multihead_attention.1} parent=1 // pred_check_branch
      %17 = sbr.rel (0) target = $region13
    $region12: #{multihead_attention.1} parent=1 // pred_region
      _
    $region13: #{multihead_attention.1} parent=1 // pred_fallthru
      _
    %v18 = vld [vmem:[%s0] sm:$0xff]
    %v19 = vld [vmem:[%s0 + $0x8] sm:$0xff]
    %v20 = vld [vmem:[%s0 + $0x10] sm:$0xff]
    %v21 = vld [vmem:[%s0 + $0x18] sm:$0xff]
    %v22 = vld [vmem:[%s1] sm:$0xff]
    %v23 = vld [vmem:[%s1 + $0x8] sm:$0xff]
    %v24 = vld [vmem:[%s1 + $0x10] sm:$0xff]
    %v25 = vld [vmem:[%s1 + $0x18] sm:$0xff]
    %v26 = vld [vmem:[%s2] sm:$0x1]
    %v28 = vlaneseq
    %v29 = vshrl.u32 %v28, 7
    %v30 = vsub.s32 0, %v29
    %v31 = vrot.slane %v26, %v30
    %vm33 = vcmask 261120
    %v35 = vsel %vm33, %v18, 0
    %v38 = vsel %vm33, %v19, 0
    %v41 = vsel %vm33, %v20, 0
    %v44 = vsel %vm33, %v21, 0
    %46 = vmatprep.subr.mxu0 0.0
    %47 = vmatpush1.msra.mxu0 %v22
    %48 = vmatprep.subr.mxu0 0.0
    %49 = vmatpush1.msra.mxu0 %v23
    %50 = vmatprep.subr.mxu0 0.0
    %51 = vmatpush1.msra.mxu0 %v24
    %52 = vmatprep.subr.mxu0 0.0
    %53 = vmatpush1.msra.mxu0 %v25
    %54 = vmatprep.subr.mxu0 0.0
    %55 = vmatpush1.msra.mxu0 0.0
    %56 = vmatprep.subr.mxu0 0.0
    %57 = vmatpush1.msra.mxu0 0.0
    %58 = vmatprep.subr.mxu0 0.0
    %59 = vmatpush1.msra.mxu0 0.0
    %60 = vmatprep.subr.mxu0 0.0
    %61 = vmatpush1.msra.mxu0 0.0
    %62 = vmatprep.subr.mxu0 0.0
    %63 = vmatpush1.msra.mxu0 0.0
    %64 = vmatprep.subr.mxu0 0.0
    %65 = vmatpush1.msra.mxu0 0.0
    %66 = vmatprep.subr.mxu0 0.0
    %67 = vmatpush1.msra.mxu0 0.0
    %68 = vmatprep.subr.mxu0 0.0
    %69 = vmatpush1.msra.mxu0 0.0
    %70 = vmatprep.subr.mxu0 0.0
    %71 = vmatpush1.msra.mxu0 0.0
    %72 = vmatprep.subr.mxu0 0.0
    %73 = vmatpush1.msra.mxu0 0.0
    %74 = vmatprep.subr.mxu0 0.0
    %75 = vmatpush1.msra.mxu0 0.0
    %76 = vmatprep.subr.mxu0 0.0
    %77 = vmatpush1.msra.mxu0 0.0
    %78 = vmatprep.subr.mxu0 0.0
    %79 = vmatpush1.msra.mxu0 0.0
    %80 = vmatprep.subr.mxu0 0.0
    %81 = vmatpush1.msra.mxu0 0.0
    %82 = vmatprep.subr.mxu0 0.0
    %83 = vmatpush1.msra.mxu0 0.0
    %84 = vmatprep.subr.mxu0 0.0
    %85 = vmatpush1.msra.mxu0 0.0
    %86 = vmatprep.subr.mxu0 0.0
    %87 = vmatpush1.msra.mxu0 0.0
    %88 = vmatprep.subr.mxu0 0.0
    %89 = vmatpush1.msra.mxu0 0.0
    %90 = vmatprep.subr.mxu0 0.0
    %91 = vmatpush1.msra.mxu0 0.0
    %92 = vmatprep.subr.mxu0 0.0
    %93 = vmatpush1.msra.mxu0 0.0
    %94 = vmatprep.subr.mxu0 0.0
    %95 = vmatpush1.msra.mxu0 0.0
    %96 = vmatprep.subr.mxu0 0.0
    %97 = vmatpush1.msra.mxu0 0.0
    %98 = vmatprep.subr.mxu0 0.0
    %99 = vmatpush1.msra.mxu0 0.0
    %100 = vmatprep.subr.mxu0 0.0
    %101 = vmatpush1.msra.mxu0 0.0
    %102 = vmatprep.subr.mxu0 0.0
    %103 = vmatpush1.msra.mxu0 0.0
    %104 = vmatprep.subr.mxu0 0.0
    %105 = vmatpush1.msra.mxu0 0.0
    %106 = vmatprep.subr.mxu0 0.0
    %107 = vmatpush1.msra.mxu0 0.0
    %108 = vmatprep.subr.mxu0 0.0
    %109 = vmatpush1.msra.mxu0 0.0
    %110 = vmatprep.mubr.f32.mxu0 0.0
    %111 = vmatmul.mubr.f32.gmra.mrb[0].mxu0 %v35
    %v112 = vpop.f32.mrb[0].mxu0
    %v113 = vadd.f32 %v31, %v112
    %v114 = vpop.f32.mrb[0].mxu0
    %115 = vmatprep.mubr.f32.mxu0 0.0
    %116 = vmatmul.mubr.f32.gmra.mrb[0].mxu0 %v38
    %v117 = vpop.f32.mrb[0].mxu0
    %v118 = vadd.f32 %v31, %v117
    %v119 = vpop.f32.mrb[0].mxu0
    %120 = vmatprep.mubr.f32.mxu0 0.0
    %121 = vmatmul.mubr.f32.gmra.mrb[0].mxu0 %v41
    %v122 = vpop.f32.mrb[0].mxu0
    %v123 = vadd.f32 %v31, %v122
    %v124 = vpop.f32.mrb[0].mxu0
    %125 = vmatprep.mubr.f32.mxu0 0.0
    %126 = vmatmul.mubr.f32.gmra.mrb[0].mxu0 %v44
    %v127 = vpop.f32.mrb[0].mxu0
    %v128 = vadd.f32 %v31, %v127
    %v129 = vpop.f32.mrb[0].mxu0
    %130 = vdwg.mxu0
    %132 = vrot.lane.b32.xlu0 %v123, 96
    %v133 = vpop.permute.xlu0 %132
    %v135 = vsel %vm33, %v113, 0
    %v137 = vsel %vm33, %v133, 0
    %139 = vmatprep.subr.mxu0 0.0
    %140 = vmatpush1.xpose.msra.mxu0 %v137
    %141 = vmatprep.subr.mxu0 0.0
    %142 = vmatpush1.xpose.msra.mxu0 0.0
    %143 = vmatprep.subr.mxu0 0.0
    %144 = vmatpush1.xpose.msra.mxu0 0.0
    %145 = vmatprep.subr.mxu0 0.0
    %146 = vmatpush1.xpose.msra.mxu0 0.0
    %147 = vmatprep.subr.mxu0 0.0
    %148 = vmatpush1.xpose.msra.mxu0 0.0
    %149 = vmatprep.subr.mxu0 0.0
    %150 = vmatpush1.xpose.msra.mxu0 0.0
    %151 = vmatprep.subr.mxu0 0.0
    %152 = vmatpush1.xpose.msra.mxu0 0.0
    %153 = vmatprep.subr.mxu0 0.0
    %154 = vmatpush1.xpose.msra.mxu0 0.0
    %155 = vmatprep.subr.mxu0 0.0
    %156 = vmatpush1.xpose.msra.mxu0 0.0
    %157 = vmatprep.subr.mxu0 0.0
    %158 = vmatpush1.xpose.msra.mxu0 0.0
    %159 = vmatprep.subr.mxu0 0.0
    %160 = vmatpush1.xpose.msra.mxu0 0.0
    %161 = vmatprep.subr.mxu0 0.0
    %162 = vmatpush1.xpose.msra.mxu0 0.0
    %163 = vmatprep.subr.mxu0 0.0
    %164 = vmatpush1.xpose.msra.mxu0 0.0
    %165 = vmatprep.subr.mxu0 0.0
    %166 = vmatpush1.xpose.msra.mxu0 0.0
    %167 = vmatprep.subr.mxu0 0.0
    %168 = vmatpush1.xpose.msra.mxu0 0.0
    %169 = vmatprep.subr.mxu0 0.0
    %170 = vmatpush1.xpose.msra.mxu0 0.0
    %171 = vmatprep.subr.mxu0 0.0
    %172 = vmatpush1.xpose.msra.mxu0 0.0
    %173 = vmatprep.subr.mxu0 0.0
    %174 = vmatpush1.xpose.msra.mxu0 0.0
    %175 = vmatprep.subr.mxu0 0.0
    %176 = vmatpush1.xpose.msra.mxu0 0.0
    %177 = vmatprep.subr.mxu0 0.0
    %178 = vmatpush1.xpose.msra.mxu0 0.0
    %179 = vmatprep.subr.mxu0 0.0
    %180 = vmatpush1.xpose.msra.mxu0 0.0
    %181 = vmatprep.subr.mxu0 0.0
    %182 = vmatpush1.xpose.msra.mxu0 0.0
    %183 = vmatprep.subr.mxu0 0.0
    %184 = vmatpush1.xpose.msra.mxu0 0.0
    %185 = vmatprep.subr.mxu0 0.0
    %186 = vmatpush1.xpose.msra.mxu0 0.0
    %187 = vmatprep.subr.mxu0 0.0
    %188 = vmatpush1.xpose.msra.mxu0 0.0
    %189 = vmatprep.subr.mxu0 0.0
    %190 = vmatpush1.xpose.msra.mxu0 0.0
    %191 = vmatprep.subr.mxu0 0.0
    %192 = vmatpush1.xpose.msra.mxu0 0.0
    %193 = vmatprep.subr.mxu0 0.0
    %194 = vmatpush1.xpose.msra.mxu0 0.0
    %195 = vmatprep.subr.mxu0 0.0
    %196 = vmatpush1.xpose.msra.mxu0 0.0
    %197 = vmatprep.subr.mxu0 0.0
    %198 = vmatpush1.xpose.msra.mxu0 0.0
    %199 = vmatprep.subr.mxu0 0.0
    %200 = vmatpush1.xpose.msra.mxu0 0.0
    %201 = vmatprep.subr.mxu0 0.0
    %202 = vmatpush1.xpose.msra.mxu0 0.0
    %203 = vmatprep.mubr.f32.mxu0 0.0
    %204 = vmatmul.mubr.f32.gmra.mrb[0].mxu0 %v135
    %v205 = vpop.f32.mrb[0].mxu0
    %v206 = vadd.f32 0.0, %v205
    %v207 = vpop.f32.mrb[0].mxu0
    %208 = vdwg.mxu0
    %210 = vrot.lane.b32.xlu0 %v128, 96
    %v211 = vpop.permute.xlu0 %210
    %v213 = vsel %vm33, %v118, 0
    %v215 = vsel %vm33, %v211, 0
    %217 = vmatprep.subr.mxu0 0.0
    %218 = vmatpush1.xpose.msra.mxu0 %v215
    %219 = vmatprep.subr.mxu0 0.0
    %220 = vmatpush1.xpose.msra.mxu0 0.0
    %221 = vmatprep.subr.mxu0 0.0
    %222 = vmatpush1.xpose.msra.mxu0 0.0
    %223 = vmatprep.subr.mxu0 0.0
    %224 = vmatpush1.xpose.msra.mxu0 0.0
    %225 = vmatprep.subr.mxu0 0.0
    %226 = vmatpush1.xpose.msra.mxu0 0.0
    %227 = vmatprep.subr.mxu0 0.0
    %228 = vmatpush1.xpose.msra.mxu0 0.0
    %229 = vmatprep.subr.mxu0 0.0
    %230 = vmatpush1.xpose.msra.mxu0 0.0
    %231 = vmatprep.subr.mxu0 0.0
    %232 = vmatpush1.xpose.msra.mxu0 0.0
    %233 = vmatprep.subr.mxu0 0.0
    %234 = vmatpush1.xpose.msra.mxu0 0.0
    %235 = vmatprep.subr.mxu0 0.0
    %236 = vmatpush1.xpose.msra.mxu0 0.0
    %237 = vmatprep.subr.mxu0 0.0
    %238 = vmatpush1.xpose.msra.mxu0 0.0
    %239 = vmatprep.subr.mxu0 0.0
    %240 = vmatpush1.xpose.msra.mxu0 0.0
    %241 = vmatprep.subr.mxu0 0.0
    %242 = vmatpush1.xpose.msra.mxu0 0.0
    %243 = vmatprep.subr.mxu0 0.0
    %244 = vmatpush1.xpose.msra.mxu0 0.0
    %245 = vmatprep.subr.mxu0 0.0
    %246 = vmatpush1.xpose.msra.mxu0 0.0
    %247 = vmatprep.subr.mxu0 0.0
    %248 = vmatpush1.xpose.msra.mxu0 0.0
    %249 = vmatprep.subr.mxu0 0.0
    %250 = vmatpush1.xpose.msra.mxu0 0.0
    %251 = vmatprep.subr.mxu0 0.0
    %252 = vmatpush1.xpose.msra.mxu0 0.0
    %253 = vmatprep.subr.mxu0 0.0
    %254 = vmatpush1.xpose.msra.mxu0 0.0
    %255 = vmatprep.subr.mxu0 0.0
    %256 = vmatpush1.xpose.msra.mxu0 0.0
    %257 = vmatprep.subr.mxu0 0.0
    %258 = vmatpush1.xpose.msra.mxu0 0.0
    %259 = vmatprep.subr.mxu0 0.0
    %260 = vmatpush1.xpose.msra.mxu0 0.0
    %261 = vmatprep.subr.mxu0 0.0
    %262 = vmatpush1.xpose.msra.mxu0 0.0
    %263 = vmatprep.subr.mxu0 0.0
    %264 = vmatpush1.xpose.msra.mxu0 0.0
    %265 = vmatprep.subr.mxu0 0.0
    %266 = vmatpush1.xpose.msra.mxu0 0.0
    %267 = vmatprep.subr.mxu0 0.0
    %268 = vmatpush1.xpose.msra.mxu0 0.0
    %269 = vmatprep.subr.mxu0 0.0
    %270 = vmatpush1.xpose.msra.mxu0 0.0
    %271 = vmatprep.subr.mxu0 0.0
    %272 = vmatpush1.xpose.msra.mxu0 0.0
    %273 = vmatprep.subr.mxu0 0.0
    %274 = vmatpush1.xpose.msra.mxu0 0.0
    %275 = vmatprep.subr.mxu0 0.0
    %276 = vmatpush1.xpose.msra.mxu0 0.0
    %277 = vmatprep.subr.mxu0 0.0
    %278 = vmatpush1.xpose.msra.mxu0 0.0
    %279 = vmatprep.subr.mxu0 0.0
    %280 = vmatpush1.xpose.msra.mxu0 0.0
    %281 = vmatprep.mubr.f32.mxu0 0.0
    %282 = vmatmul.mubr.f32.gmra.mrb[0].mxu0 %v213
    %v283 = vpop.f32.mrb[0].mxu0
    %v284 = vadd.f32 0.0, %v283
    %v285 = vpop.f32.mrb[0].mxu0
    %286 = vdwg.mxu0
    %vm287 = vcmask 64512
    %v288 = vsel %vm287, %v206, -inf
    %289 = vmax.xlane.f32.xlu0 %v288
    %v290 = vpop.xlane.xlu0 %289
    %v291 = vsel %vm287, %v284, -inf
    %292 = vmax.xlane.f32.xlu0 %v291
    %v293 = vpop.xlane.xlu0 %292
    %v294 = vsub.f32 %v206, %v290
    %v295 = vsub.f32 %v284, %v293
    %v296 = vmul.f32 %v294, 1.442695
    %v297 = vpow.pop %v296
    %v298 = vmul.f32 %v295, 1.442695
    %v299 = vpow.pop %v298
    %v300 = vsel %vm287, %v297, 0.0
    %301 = vadd.xlane.f32.xlu0 %v300
    %v302 = vpop.xlane.xlu0 %301
    %v303 = vsel %vm287, %v299, 0.0
    %304 = vadd.xlane.f32.xlu0 %v303
    %v305 = vpop.xlane.xlu0 %304
    %v306 = vrcp.pop %v302
    %v307 = vmul.f32 %v297, %v306
    %v308 = vrcp.pop %v305
    %v309 = vmul.f32 %v299, %v308
    %310 = vrot.lane.b32.xlu0 %v123, 64
    %v311 = vpop.permute.xlu0 %310
    %v314 = vsel %vm287, %v307, 0
    %316 = vmatprep.subr.mxu0 0.0
    %317 = vmatpush1.msra.mxu0 %v311
    %318 = vmatprep.subr.mxu0 0.0
    %319 = vmatpush1.msra.mxu0 0.0
    %320 = vmatprep.subr.mxu0 0.0
    %321 = vmatpush1.msra.mxu0 0.0
    %322 = vmatprep.subr.mxu0 0.0
    %323 = vmatpush1.msra.mxu0 0.0
    %324 = vmatprep.subr.mxu0 0.0
    %325 = vmatpush1.msra.mxu0 0.0
    %326 = vmatprep.subr.mxu0 0.0
    %327 = vmatpush1.msra.mxu0 0.0
    %328 = vmatprep.subr.mxu0 0.0
    %329 = vmatpush1.msra.mxu0 0.0
    %330 = vmatprep.subr.mxu0 0.0
    %331 = vmatpush1.msra.mxu0 0.0
    %332 = vmatprep.subr.mxu0 0.0
    %333 = vmatpush1.msra.mxu0 0.0
    %334 = vmatprep.subr.mxu0 0.0
    %335 = vmatpush1.msra.mxu0 0.0
    %336 = vmatprep.subr.mxu0 0.0
    %337 = vmatpush1.msra.mxu0 0.0
    %338 = vmatprep.subr.mxu0 0.0
    %339 = vmatpush1.msra.mxu0 0.0
    %340 = vmatprep.subr.mxu0 0.0
    %341 = vmatpush1.msra.mxu0 0.0
    %342 = vmatprep.subr.mxu0 0.0
    %343 = vmatpush1.msra.mxu0 0.0
    %344 = vmatprep.subr.mxu0 0.0
    %345 = vmatpush1.msra.mxu0 0.0
    %346 = vmatprep.subr.mxu0 0.0
    %347 = vmatpush1.msra.mxu0 0.0
    %348 = vmatprep.subr.mxu0 0.0
    %349 = vmatpush1.msra.mxu0 0.0
    %350 = vmatprep.subr.mxu0 0.0
    %351 = vmatpush1.msra.mxu0 0.0
    %352 = vmatprep.subr.mxu0 0.0
    %353 = vmatpush1.msra.mxu0 0.0
    %354 = vmatprep.subr.mxu0 0.0
    %355 = vmatpush1.msra.mxu0 0.0
    %356 = vmatprep.subr.mxu0 0.0
    %357 = vmatpush1.msra.mxu0 0.0
    %358 = vmatprep.subr.mxu0 0.0
    %359 = vmatpush1.msra.mxu0 0.0
    %360 = vmatprep.subr.mxu0 0.0
    %361 = vmatpush1.msra.mxu0 0.0
    %362 = vmatprep.subr.mxu0 0.0
    %363 = vmatpush1.msra.mxu0 0.0
    %364 = vmatprep.subr.mxu0 0.0
    %365 = vmatpush1.msra.mxu0 0.0
    %366 = vmatprep.subr.mxu0 0.0
    %367 = vmatpush1.msra.mxu0 0.0
    %368 = vmatprep.subr.mxu0 0.0
    %369 = vmatpush1.msra.mxu0 0.0
    %370 = vmatprep.subr.mxu0 0.0
    %371 = vmatpush1.msra.mxu0 0.0
    %372 = vmatprep.subr.mxu0 0.0
    %373 = vmatpush1.msra.mxu0 0.0
    %374 = vmatprep.subr.mxu0 0.0
    %375 = vmatpush1.msra.mxu0 0.0
    %376 = vmatprep.subr.mxu0 0.0
    %377 = vmatpush1.msra.mxu0 0.0
    %378 = vmatprep.subr.mxu0 0.0
    %379 = vmatpush1.msra.mxu0 0.0
    %380 = vmatprep.mubr.f32.mxu0 0.0
    %381 = vmatmul.mubr.f32.gmra.mrb[0].mxu0 %v314
    %v382 = vpop.f32.mrb[0].mxu0
    %v383 = vadd.f32 0.0, %v382
    %v384 = vpop.f32.mrb[0].mxu0
    %385 = vdwg.mxu0
    %386 = vrot.lane.b32.xlu0 %v128, 64
    %v387 = vpop.permute.xlu0 %386
    %v390 = vsel %vm287, %v309, 0
    %392 = vmatprep.subr.mxu0 0.0
    %393 = vmatpush1.msra.mxu0 %v387
    %394 = vmatprep.subr.mxu0 0.0
    %395 = vmatpush1.msra.mxu0 0.0
    %396 = vmatprep.subr.mxu0 0.0
    %397 = vmatpush1.msra.mxu0 0.0
    %398 = vmatprep.subr.mxu0 0.0
    %399 = vmatpush1.msra.mxu0 0.0
    %400 = vmatprep.subr.mxu0 0.0
    %401 = vmatpush1.msra.mxu0 0.0
    %402 = vmatprep.subr.mxu0 0.0
    %403 = vmatpush1.msra.mxu0 0.0
    %404 = vmatprep.subr.mxu0 0.0
    %405 = vmatpush1.msra.mxu0 0.0
    %406 = vmatprep.subr.mxu0 0.0
    %407 = vmatpush1.msra.mxu0 0.0
    %408 = vmatprep.subr.mxu0 0.0
    %409 = vmatpush1.msra.mxu0 0.0
    %410 = vmatprep.subr.mxu0 0.0
    %411 = vmatpush1.msra.mxu0 0.0
    %412 = vmatprep.subr.mxu0 0.0
    %413 = vmatpush1.msra.mxu0 0.0
    %414 = vmatprep.subr.mxu0 0.0
    %415 = vmatpush1.msra.mxu0 0.0
    %416 = vmatprep.subr.mxu0 0.0
    %417 = vmatpush1.msra.mxu0 0.0
    %418 = vmatprep.subr.mxu0 0.0
    %419 = vmatpush1.msra.mxu0 0.0
    %420 = vmatprep.subr.mxu0 0.0
    %421 = vmatpush1.msra.mxu0 0.0
    %422 = vmatprep.subr.mxu0 0.0
    %423 = vmatpush1.msra.mxu0 0.0
    %424 = vmatprep.subr.mxu0 0.0
    %425 = vmatpush1.msra.mxu0 0.0
    %426 = vmatprep.subr.mxu0 0.0
    %427 = vmatpush1.msra.mxu0 0.0
    %428 = vmatprep.subr.mxu0 0.0
    %429 = vmatpush1.msra.mxu0 0.0
    %430 = vmatprep.subr.mxu0 0.0
    %431 = vmatpush1.msra.mxu0 0.0
    %432 = vmatprep.subr.mxu0 0.0
    %433 = vmatpush1.msra.mxu0 0.0
    %434 = vmatprep.subr.mxu0 0.0
    %435 = vmatpush1.msra.mxu0 0.0
    %436 = vmatprep.subr.mxu0 0.0
    %437 = vmatpush1.msra.mxu0 0.0
    %438 = vmatprep.subr.mxu0 0.0
    %439 = vmatpush1.msra.mxu0 0.0
    %440 = vmatprep.subr.mxu0 0.0
    %441 = vmatpush1.msra.mxu0 0.0
    %442 = vmatprep.subr.mxu0 0.0
    %443 = vmatpush1.msra.mxu0 0.0
    %444 = vmatprep.subr.mxu0 0.0
    %445 = vmatpush1.msra.mxu0 0.0
    %446 = vmatprep.subr.mxu0 0.0
    %447 = vmatpush1.msra.mxu0 0.0
    %448 = vmatprep.subr.mxu0 0.0
    %449 = vmatpush1.msra.mxu0 0.0
    %450 = vmatprep.subr.mxu0 0.0
    %451 = vmatpush1.msra.mxu0 0.0
    %452 = vmatprep.subr.mxu0 0.0
    %453 = vmatpush1.msra.mxu0 0.0
    %454 = vmatprep.subr.mxu0 0.0
    %455 = vmatpush1.msra.mxu0 0.0
    %456 = vmatprep.mubr.f32.mxu0 0.0
    %457 = vmatmul.mubr.f32.gmra.mrb[0].mxu0 %v390
    %v458 = vpop.f32.mrb[0].mxu0
    %v459 = vadd.f32 0.0, %v458
    %v460 = vpop.f32.mrb[0].mxu0
    %461 = vdwg.mxu0
    %466 = vrot.lane.b32.xlu0 %v22, 32
    %v467 = vpop.permute.xlu0 %466
    %468 = vrot.lane.b32.xlu0 %v23, 32
    %v469 = vpop.permute.xlu0 %468
    %470 = vrot.lane.b32.xlu0 %v24, 32
    %v471 = vpop.permute.xlu0 %470
    %472 = vrot.lane.b32.xlu0 %v25, 32
    %v473 = vpop.permute.xlu0 %472
    %478 = vrot.lane.b32.xlu0 %v31, 32
    %v479 = vpop.permute.xlu0 %478
    %v482 = vsel %vm33, %v383, 0
    %v485 = vsel %vm33, %v459, 0
    %487 = vmatprep.subr.mxu0 0.0
    %488 = vmatpush1.msra.mxu0 %v467
    %489 = vmatprep.subr.mxu0 0.0
    %490 = vmatpush1.msra.mxu0 %v469
    %491 = vmatprep.subr.mxu0 0.0
    %492 = vmatpush1.msra.mxu0 %v471
    %493 = vmatprep.subr.mxu0 0.0
    %494 = vmatpush1.msra.mxu0 %v473
    %495 = vmatprep.subr.mxu0 0.0
    %496 = vmatpush1.msra.mxu0 0.0
    %497 = vmatprep.subr.mxu0 0.0
    %498 = vmatpush1.msra.mxu0 0.0
    %499 = vmatprep.subr.mxu0 0.0
    %500 = vmatpush1.msra.mxu0 0.0
    %501 = vmatprep.subr.mxu0 0.0
    %502 = vmatpush1.msra.mxu0 0.0
    %503 = vmatprep.subr.mxu0 0.0
    %504 = vmatpush1.msra.mxu0 0.0
    %505 = vmatprep.subr.mxu0 0.0
    %506 = vmatpush1.msra.mxu0 0.0
    %507 = vmatprep.subr.mxu0 0.0
    %508 = vmatpush1.msra.mxu0 0.0
    %509 = vmatprep.subr.mxu0 0.0
    %510 = vmatpush1.msra.mxu0 0.0
    %511 = vmatprep.subr.mxu0 0.0
    %512 = vmatpush1.msra.mxu0 0.0
    %513 = vmatprep.subr.mxu0 0.0
    %514 = vmatpush1.msra.mxu0 0.0
    %515 = vmatprep.subr.mxu0 0.0
    %516 = vmatpush1.msra.mxu0 0.0
    %517 = vmatprep.subr.mxu0 0.0
    %518 = vmatpush1.msra.mxu0 0.0
    %519 = vmatprep.subr.mxu0 0.0
    %520 = vmatpush1.msra.mxu0 0.0
    %521 = vmatprep.subr.mxu0 0.0
    %522 = vmatpush1.msra.mxu0 0.0
    %523 = vmatprep.subr.mxu0 0.0
    %524 = vmatpush1.msra.mxu0 0.0
    %525 = vmatprep.subr.mxu0 0.0
    %526 = vmatpush1.msra.mxu0 0.0
    %527 = vmatprep.subr.mxu0 0.0
    %528 = vmatpush1.msra.mxu0 0.0
    %529 = vmatprep.subr.mxu0 0.0
    %530 = vmatpush1.msra.mxu0 0.0
    %531 = vmatprep.subr.mxu0 0.0
    %532 = vmatpush1.msra.mxu0 0.0
    %533 = vmatprep.subr.mxu0 0.0
    %534 = vmatpush1.msra.mxu0 0.0
    %535 = vmatprep.subr.mxu0 0.0
    %536 = vmatpush1.msra.mxu0 0.0
    %537 = vmatprep.subr.mxu0 0.0
    %538 = vmatpush1.msra.mxu0 0.0
    %539 = vmatprep.subr.mxu0 0.0
    %540 = vmatpush1.msra.mxu0 0.0
    %541 = vmatprep.subr.mxu0 0.0
    %542 = vmatpush1.msra.mxu0 0.0
    %543 = vmatprep.subr.mxu0 0.0
    %544 = vmatpush1.msra.mxu0 0.0
    %545 = vmatprep.subr.mxu0 0.0
    %546 = vmatpush1.msra.mxu0 0.0
    %547 = vmatprep.subr.mxu0 0.0
    %548 = vmatpush1.msra.mxu0 0.0
    %549 = vmatprep.subr.mxu0 0.0
    %550 = vmatpush1.msra.mxu0 0.0
    %551 = vmatprep.mubr.f32.mxu0 0.0
    %552 = vmatmul.mubr.f32.gmra.mrb[0].mxu0 %v482
    %v553 = vpop.f32.mrb[0].mxu0
    %v554 = vadd.f32 %v479, %v553
    %v555 = vpop.f32.mrb[0].mxu0
    %556 = vmatprep.mubr.f32.mxu0 0.0
    %557 = vmatmul.mubr.f32.gmra.mrb[0].mxu0 %v485
    %v558 = vpop.f32.mrb[0].mxu0
    %v559 = vadd.f32 %v479, %v558
    %v560 = vpop.f32.mrb[0].mxu0
    %561 = vdwg.mxu0
    %562 = vst.msk [vmem:[#allocation2] sm:$0xff] %vm33, %v554
    %563 = vst.msk [vmem:[#allocation2 + $0x8] sm:$0xff] %vm33, %v559
    %564 = vst.msk [vmem:[#allocation4] sm:$0xff] %vm287, %v307
    %565 = vst.msk [vmem:[#allocation4 + $0x8] sm:$0xff] %vm287, %v309
    // Predicated region
    $region14: #{multihead_attention.1} parent=1 // pred_check
      _
    $region15: #{multihead_attention.1} parent=1 // pred_check_branch
      %567 = sbr.rel (0) target = $region17
    $region16: #{multihead_attention.1} parent=1 // pred_region
      %s569 = ssub.s32 256, 256
      %570 = vsyncadd [#allocation3], %s569
      %s571 = sshll.u32 [#allocation2], 4
      %s572 = int_to_ptr.vmem [resolvable:$true] %s571
      %577 = dma.vmem_to_hbm [thread:$0]  %s572, 256, %s3, [#allocation3], 128, 128, 8
    $region17: #{multihead_attention.1} parent=1 // pred_fallthru
      _
    // Predicated region
    $region18: #{multihead_attention.1} parent=1 // pred_check
      _
    $region19: #{multihead_attention.1} parent=1 // pred_check_branch
      %579 = sbr.rel (0) target = $region21
    $region20: #{multihead_attention.1} parent=1 // pred_region
      %s581 = ssub.s32 256, 256
      %582 = vsyncadd [#allocation5], %s581
      %s583 = sshll.u32 [#allocation4], 4
      %s584 = int_to_ptr.vmem [resolvable:$true] %s583
      %589 = dma.vmem_to_hbm [thread:$0]  %s584, 256, %s4, [#allocation5], 128, 128, 8
    $region21: #{multihead_attention.1} parent=1 // pred_fallthru
      _
    // Predicated region
    $region22: #{multihead_attention.1} parent=1 // pred_check
      _
    $region23: #{multihead_attention.1} parent=1 // pred_check_branch
      %591 = sbr.rel (0) target = $region25
    $region24: #{multihead_attention.1} parent=1 // pred_region
      %592 = dma.done [#allocation3], 256
    $region25: #{multihead_attention.1} parent=1 // pred_fallthru
      _
    // Predicated region
    $region26: #{multihead_attention.1} parent=1 // pred_check
      _
    $region27: #{multihead_attention.1} parent=1 // pred_check_branch
      %594 = sbr.rel (0) target = $region29
    $region28: #{multihead_attention.1} parent=1 // pred_region
      %595 = dma.done [#allocation5], 256
    $region29: #{multihead_attention.1} parent=1 // pred_fallthru
      _
    %596 = vsyncpa [#allocation3], 1
    %597 = vsyncpa [#allocation5], 1

</llo_original>
